<compile_context>
chip_gen: v6e
topology: v6e:2x2x1
jax: 0.10.0
libtpu: 0.0.40
codegen_flags: <defaults>
</compile_context>

<pallas_src>
import functools

import jax
import jax.numpy as jnp
from jax.experimental import pallas as pl
from jax.experimental.pallas import tpu as pltpu

MAX_BLOCK_ELEMS = 1024 * 1024      # ~4 MiB f32 per operand buffer per step


def _round_up(x: int, m: int) -> int:
    return ((x + m - 1) // m) * m


def _num_tensorcores() -> int:
    """TensorCores one pallas_call can shard a 'parallel' grid axis across."""
    try:
        kind = jax.devices()[0].device_kind.lower()
    except Exception:  # pragma: no cover
        return 1
    if "lite" in kind or "v5e" in kind or "v6e" in kind:
        return 1                        # single-TC chips (v5e / v6e)
    if "v4" in kind or "v5" in kind or "v7" in kind or "7x" in kind:
        return 2                        # megacore (v4/v5p) or dual-TC (v7x)
    return 1


def _l1_sum_kernel(a_ref, b_ref, o_ref, acc_ref, *,
                   block_rows, acc_rows, width,
                   blocks_per_split, total_blocks,
                   n_full_rows, tail_lanes,
                   needs_mask, has_dups):
    """Accumulate sum(|a - b|) over this split's contiguous block range."""
    i = pl.program_id(1)

    @pl.when(i == 0)
    def _():
        acc_ref[...] = jnp.zeros_like(acc_ref)

    logical_block = pl.program_id(0) * blocks_per_split + i

    def partial_sums(mask_tail):
        diff = jnp.abs(a_ref[...].astype(jnp.float32)
                       - b_ref[...].astype(jnp.float32))
        if mask_tail:
            # Only emitted for the single ragged last block: zero out elements
            # whose flat index is >= n_elem (garbage rows / partial last row).
            row = jax.lax.broadcasted_iota(jnp.int32, (block_rows, width), 0)
            lane = jax.lax.broadcasted_iota(jnp.int32, (block_rows, width), 1)
            g_row = logical_block * block_rows + row
            valid = (g_row < n_full_rows) | (
                (g_row == n_full_rows) & (lane < tail_lanes))
            diff = jnp.where(valid, diff, 0.0)
        if block_rows == acc_rows:
            return diff
        # Leading-axis sum: pure VALU vreg adds into an (acc_rows, width) acc.
        return diff.reshape(-1, acc_rows, width).sum(axis=0)

    if not needs_mask and not has_dups:
        acc_ref[...] += partial_sums(False)            # fast path: no masking
    else:
        last = total_blocks - 1

        @pl.when(logical_block < last)                 # interior: no masking
        def _():
            acc_ref[...] += partial_sums(False)

        @pl.when(logical_block == last)                # ragged last block
        def _():
            acc_ref[...] += partial_sums(needs_mask)
        # logical_block > last: clamped duplicate block -> contributes nothing.

    @pl.when(i == pl.num_programs(1) - 1)
    def _():
        o_ref[0, 0] = jnp.sum(acc_ref[...])


def _l1_sum_pallas(a2d: jax.Array, b2d: jax.Array, n_elem: int,
                   max_block_elems: int = MAX_BLOCK_ELEMS) -> jax.Array:
    """sum(|a2d - b2d|) over the first n_elem flat elements, in float32."""
    n_rows, width = a2d.shape
    itemsize_a = jnp.dtype(a2d.dtype).itemsize
    itemsize_b = jnp.dtype(b2d.dtype).itemsize
    # Sub-32-bit dtypes pack along sublanes: tile rows must respect the packed
    # sublane multiple of the narrowest input dtype (8 f32 / 16 bf16 / 32 i8).
    sublane = max(8, 32 // min(itemsize_a, itemsize_b))

    num_splits = _num_tensorcores()

    # Rows per block: big enough to amortize the ~0.35us per-grid-step
    # overhead, small enough for VMEM, split ~evenly across TensorCores.
    max_rows = max(sublane, (max_block_elems // width) // sublane * sublane)
    block_rows = min(max_rows, _round_up(pl.cdiv(n_rows, num_splits), sublane))
    if block_rows >= n_rows:
        block_rows = n_rows              # full-extent block (always legal)

    total_blocks = pl.cdiv(n_rows, block_rows)
    num_splits = min(num_splits, total_blocks)
    blocks_per_split = pl.cdiv(total_blocks, num_splits)
    has_dups = num_splits * blocks_per_split > total_blocks
    needs_mask = total_blocks * block_rows * width != n_elem

    # Small accumulator: 8 sublanes (f32) unless the whole block is smaller.
    acc_rows = 8 if block_rows % 8 == 0 else block_rows

    if has_dups:
        # Out-of-range blocks (last split only) clamp to the last real block,
        # which equals the previous step's block index -> the pipeline skips
        # the redundant DMA, and the kernel skips their compute.
        def in_map(c, i):
            return (jnp.minimum(c * blocks_per_split + i, total_blocks - 1), 0)
    else:
        def in_map(c, i):
            return (c * blocks_per_split + i, 0)

    kernel = functools.partial(
        _l1_sum_kernel,
        block_rows=block_rows, acc_rows=acc_rows, width=width,
        blocks_per_split=blocks_per_split, total_blocks=total_blocks,
        n_full_rows=n_elem // width, tail_lanes=n_elem % width,
        needs_mask=needs_mask, has_dups=has_dups,
    )

    # Explicit scoped-VMEM limit: 2 inputs x 2 pipeline buffers x block + acc,
    # plus slack. Stays well under 64 MiB (v7x) / 128 MiB (v5e/v6e) physical.
    block_in_bytes = block_rows * width * (itemsize_a + itemsize_b)
    vmem_needed = 2 * block_in_bytes + acc_rows * width * 4
    vmem_limit = min(max(vmem_needed + (8 << 20), 16 << 20), 48 << 20)

    bytes_accessed = n_rows * width * (itemsize_a + itemsize_b)
    cost = pl.CostEstimate(flops=3 * n_rows * width, transcendentals=0,
                           bytes_accessed=bytes_accessed)

    partials = pl.pallas_call(
        kernel,
        out_shape=jax.ShapeDtypeStruct((num_splits, 1), jnp.float32),
        grid_spec=pltpu.PrefetchScalarGridSpec(
            num_scalar_prefetch=0,
            grid=(num_splits, blocks_per_split),
            in_specs=[
                pl.BlockSpec((block_rows, width), in_map),
                pl.BlockSpec((block_rows, width), in_map),
            ],
            out_specs=pl.BlockSpec((1, 1), lambda c, i: (c, 0),
                                   memory_space=pltpu.SMEM),
            scratch_shapes=[pltpu.VMEM((acc_rows, width), jnp.float32)],
        ),
        compiler_params=pltpu.CompilerParams(
            # Reduction axis carries the accumulator/output block -> arbitrary;
            # the split axis writes disjoint output blocks -> parallel.
            dimension_semantics=("parallel", "arbitrary"),
            vmem_limit_bytes=vmem_limit,
        ),
        cost_estimate=cost,
    )(a2d, b2d)

    return jnp.sum(partials)


def cycle_loss(real: jax.Array, reconstructed: jax.Array,
               lambda_cycle: float = 10.0, *,
               max_block_elems: int = MAX_BLOCK_ELEMS) -> jax.Array:
    """lambda_cycle * mean(|real - reconstructed|)  (== nn.L1Loss 'mean')."""
    assert real.shape == reconstructed.shape
    n_elem = real.size
    if n_elem == 0:
        return jnp.float32(0.0)

    # Keep native dtype (no wrapper-side upcast -> no extra HBM traffic).
    flat_r = real.reshape(-1)
    flat_c = reconstructed.reshape(-1)

    # Widest lane-dense width dividing n_elem -> zero-copy reshape in the
    # common case. Only if n_elem is not a multiple of 128 (rare) do we pad to
    # the next multiple of 128; the kernel masks the tail by element index, so
    # pad values never affect the result.
    width = next((w for w in (1024, 512, 256, 128) if n_elem % w == 0), 128)
    padded = _round_up(n_elem, width)
    if padded != n_elem:
        flat_r = jnp.pad(flat_r, (0, padded - n_elem))
        flat_c = jnp.pad(flat_c, (0, padded - n_elem))

    a2d = flat_r.reshape(-1, width)
    b2d = flat_c.reshape(-1, width)

    total = _l1_sum_pallas(a2d, b2d, n_elem, max_block_elems=max_block_elems)
    return jnp.float32(lambda_cycle) * total / jnp.float32(n_elem)


if __name__ == "__main__":
    key = jax.random.PRNGKey(0)
    k1, k2 = jax.random.split(key)

    # Small NCHW tensors consistent with a CycleGAN forward pass.
    real = jax.random.normal(k1, (2, 4, 16, 16), dtype=jnp.float32)
    recon = jax.random.normal(k2, (2, 4, 16, 16), dtype=jnp.float32)
    loss = cycle_loss(real, recon, lambda_cycle=10.0)
    jax.block_until_ready(loss)
    ref = 10.0 * jnp.mean(jnp.abs(real - recon))
    assert jnp.allclose(loss, ref, rtol=1e-5, atol=1e-5), (loss, ref)

    # bf16 inputs stay bf16 in HBM; kernel casts to f32 in-register.
    real_bf = real.astype(jnp.bfloat16)
    recon_bf = recon.astype(jnp.bfloat16)
    loss_bf = cycle_loss(real_bf, recon_bf, lambda_cycle=10.0)
    jax.block_until_ready(loss_bf)
    ref_bf = 10.0 * jnp.mean(jnp.abs(real_bf.astype(jnp.float32)
                                     - recon_bf.astype(jnp.float32)))
    assert jnp.allclose(loss_bf, ref_bf, rtol=1e-3, atol=1e-3), (loss_bf, ref_bf)

    # n_elem % 128 != 0 exercises the padded-tail fallback.
    k3, k4 = jax.random.split(k2)
    real_r = jax.random.normal(k3, (2, 3, 5, 7), dtype=jnp.float32)
    recon_r = jax.random.normal(k4, (2, 3, 5, 7), dtype=jnp.float32)
    loss_r = cycle_loss(real_r, recon_r, lambda_cycle=10.0)
    jax.block_until_ready(loss_r)
    ref_r = 10.0 * jnp.mean(jnp.abs(real_r - recon_r))
    assert jnp.allclose(loss_r, ref_r, rtol=1e-5, atol=1e-5), (loss_r, ref_r)

    # Force multi-block reduction + ragged last block + (on 2-TC parts) a
    # clamped duplicate block, using a small max_block_elems override.
    k5, k6 = jax.random.split(k4)
    real_m = jax.random.normal(k5, (2, 5, 64, 64), dtype=jnp.float32)
    recon_m = jax.random.normal(k6, (2, 5, 64, 64), dtype=jnp.float32)
    loss_m = cycle_loss(real_m, recon_m, lambda_cycle=10.0,
                        max_block_elems=16 * 1024)
    jax.block_until_ready(loss_m)
    ref_m = 10.0 * jnp.mean(jnp.abs(real_m - recon_m))
    assert jnp.allclose(loss_m, ref_m, rtol=1e-5, atol=1e-5), (loss_m, ref_m)

    print("KERNEL_OK")
</pallas_src>

<mosaic_0001>
module attributes {stable_mosaic.version = 11 : i64} {
  func.func @_l1_sum_kernel(%arg0: i32, %arg1: i32, %arg2: memref<2x1024xf32, #tpu.memory_space<vmem>>, %arg3: memref<2x1024xf32, #tpu.memory_space<vmem>>, %arg4: memref<1x1xf32, #tpu.memory_space<smem>>, %arg5: memref<2x1024xf32, #tpu.memory_space<vmem>>) attributes {dimension_semantics = [#tpu.dimension_semantics<parallel>, #tpu.dimension_semantics<arbitrary>], iteration_bounds = array<i64: 1, 1>, scalar_prefetch = 0 : i64, scratch_operands = 1 : i64, tpu.core_type = #tpu.core_type<tc>, window_params = [{transform_indices = @transform_0, window_bounds = array<i64: 2, 1024>}, {transform_indices = @transform_1, window_bounds = array<i64: 2, 1024>}, {transform_indices = @transform_2, window_bounds = array<i64: 1, 1>}]} {
    %c0_i32 = arith.constant 0 : i32
    %0 = arith.cmpi eq, %arg1, %c0_i32 : i32
    %1 = arith.extui %0 : i1 to i32
    %c0_i32_0 = arith.constant 0 : i32
    %2 = arith.cmpi ne, %1, %c0_i32_0 : i32
    scf.if %2 {
      %cst = arith.constant 0.000000e+00 : f32
      %13 = vector.broadcast %cst : f32 to vector<2x1024xf32>
      %c0_10 = arith.constant 0 : index
      %c0_11 = arith.constant 0 : index
      %14 = vector.load %arg5[%c0_10, %c0_11] : memref<2x1024xf32, #tpu.memory_space<vmem>>, vector<2x1024xf32>
      tpu.vector_store %arg5[%c0_10, %c0_11], %13 {strides = array<i32>} : memref<2x1024xf32, #tpu.memory_space<vmem>>, vector<2x1024xf32>,
    } else {
    }
    %c0 = arith.constant 0 : index
    %c0_1 = arith.constant 0 : index
    %3 = vector.load %arg5[%c0, %c0_1] : memref<2x1024xf32, #tpu.memory_space<vmem>>, vector<2x1024xf32>
    %c0_2 = arith.constant 0 : index
    %c0_3 = arith.constant 0 : index
    %4 = vector.load %arg2[%c0_2, %c0_3] : memref<2x1024xf32, #tpu.memory_space<vmem>>, vector<2x1024xf32>
    %c0_4 = arith.constant 0 : index
    %c0_5 = arith.constant 0 : index
    %5 = vector.load %arg3[%c0_4, %c0_5] : memref<2x1024xf32, #tpu.memory_space<vmem>>, vector<2x1024xf32>
    %6 = arith.subf %4, %5 : vector<2x1024xf32>
    %7 = math.absf %6 : vector<2x1024xf32>
    %8 = arith.addf %3, %7 : vector<2x1024xf32>
    %c0_6 = arith.constant 0 : index
    %c0_7 = arith.constant 0 : index
    %9 = vector.load %arg5[%c0_6, %c0_7] : memref<2x1024xf32, #tpu.memory_space<vmem>>, vector<2x1024xf32>
    tpu.vector_store %arg5[%c0_6, %c0_7], %8 {strides = array<i32>} : memref<2x1024xf32, #tpu.memory_space<vmem>>, vector<2x1024xf32>,
    %c0_i32_8 = arith.constant 0 : i32
    %10 = arith.cmpi eq, %arg1, %c0_i32_8 : i32
    %11 = arith.extui %10 : i1 to i32
    %c0_i32_9 = arith.constant 0 : i32
    %12 = arith.cmpi ne, %11, %c0_i32_9 : i32
    scf.if %12 {
      %c0_10 = arith.constant 0 : index
      %c0_11 = arith.constant 0 : index
      %13 = vector.load %arg5[%c0_10, %c0_11] : memref<2x1024xf32, #tpu.memory_space<vmem>>, vector<2x1024xf32>
      %14 = vector.shape_cast %13 : vector<2x1024xf32> to vector<1x2x1024xf32>
      %cst = arith.constant dense<0.000000e+00> : vector<1xf32>
      %15 = vector.multi_reduction <add>, %14, %cst [1, 2] : vector<1x2x1024xf32> to vector<1xf32>
      %16 = vector.shape_cast %15 : vector<1xf32> to vector<1x1x1xf32>
      %17 = vector.extract %16[0, 0, 0] : f32 from vector<1x1x1xf32>
      %c0_12 = arith.constant 0 : index
      %c0_13 = arith.constant 0 : index
      %18 = memref.load %arg4[%c0_12, %c0_13] : memref<1x1xf32, #tpu.memory_space<smem>>
      memref.store %17, %arg4[%c0_12, %c0_13] : memref<1x1xf32, #tpu.memory_space<smem>>
    } else {
    }
    return
  }
  func.func @transform_0(%arg0: i32, %arg1: i32) -> (i32, i32) {
    %c1_i32 = arith.constant 1 : i32
    %0 = arith.muli %arg0, %c1_i32 : i32
    %1 = arith.addi %0, %arg1 : i32
    %c0_i32 = arith.constant 0 : i32
    %c0_i32_0 = arith.constant 0 : i32
    return %1, %c0_i32 : i32, i32
  }
  func.func @transform_1(%arg0: i32, %arg1: i32) -> (i32, i32) {
    %c1_i32 = arith.constant 1 : i32
    %0 = arith.muli %arg0, %c1_i32 : i32
    %1 = arith.addi %0, %arg1 : i32
    %c0_i32 = arith.constant 0 : i32
    %c0_i32_0 = arith.constant 0 : i32
    return %1, %c0_i32 : i32, i32
  }
  func.func @transform_2(%arg0: i32, %arg1: i32) -> (i32, i32) {
    %c0_i32 = arith.constant 0 : i32
    %c0_i32_0 = arith.constant 0 : i32
    return %arg0, %c0_i32 : i32, i32
  }
}

</mosaic_0001>

<llo_original>
// kernel: tpu_custom_call.1
$region0: #{tpu_custom_call.1}
  #allocation0 [shape = 'u32[]', space=smem, size = 0x4, offset = 0x4, fixed_abs, tag = 'smem constant byte address 0x4 - core index']
  #allocation1 [shape = 'u32[144,128]{1,0:T(1,128)}', space=vmem, size = 0x12000, scoped, tag = 'internal scratch']
  #allocation2 [shape = 'f32[2,1024]{1,0:T(2,128)}', space=vmem, size = 0x2000, scoped, tag = 'scratch operand']
  %s0 = inlined_call_operand.hbm [shape: f32[2,1024], index: 0, kind: input, shape index: {}]
  %s1 = inlined_call_operand.hbm [shape: f32[2,1024], index: 1, kind: input, shape index: {}]
  %s2 = inlined_call_operand.hbm [shape: f32[1,1], index: 2, kind: output, shape index: {}]
  %s3 = sld [smem:[#allocation0]]
  $region34: #{tpu_custom_call.1} parent=0
    _
  %s5 = ssub.s32 1, %s3
  %s6 = scalar_select 0, %s5, %s3
  $region1: #{tpu_custom_call.1} parent=0
    #allocation3 [shape = 'u8[8192]{0}', space=vmem, size = 0x2000, scoped, tag = 'input window, operand 0, single buffered']
    #allocation4 [shape = 's32[1]{0}', space=sflag, size = 0x4, scoped, tag = 'scoped memory for tpu_custom_call.1']
    #allocation5 [shape = 's32[1]{0}', space=sflag, size = 0x4, scoped, tag = 'scoped memory for tpu_custom_call.1']
    #allocation6 [shape = 'u8[8192]{0}', space=vmem, size = 0x2000, scoped, tag = 'input window, operand 1, single buffered']
    #allocation7 [shape = 's32[1]{0}', space=sflag, size = 0x4, scoped, tag = 'scoped memory for tpu_custom_call.1']
    #allocation8 [shape = 'u8[512]{0}', space=smem, size = 0x200, scoped, tag = 'output window, operand 0, single buffered']
    %7 = vsyncpa [#allocation4], 0
    %8 = vsyncpa [#allocation7], 0
    %9 = vsyncpa [#allocation5], 0
    // Predicated region
    $region2: #{tpu_custom_call.1} parent=1 // pred_check
      _
    $region3: #{tpu_custom_call.1} parent=1 // pred_check_branch
      %11 = sbr.rel (0) target = $region5
    $region4: #{tpu_custom_call.1} parent=1 // pred_region
      %s12 = sadd.s32 0, 0
      %s14 = ssub.s32 256, 256
      %15 = vsyncadd [#allocation4], %s14
      %s16 = smul.addr %s12, 8
      %s17 = smul.addr %s16, 32
      %s18 = scalar_lea.hbm %s0, %s17
      %s20 = sshll.u32 [#allocation3], 4
      %s21 = int_to_ptr.vmem [resolvable:$true] %s20
      %23 = dma.hbm_to_vmem [thread:$0]  %s18, 256, %s21, [#allocation4]
    $region5: #{tpu_custom_call.1} parent=1 // pred_fallthru
      _
    // Predicated region
    $region6: #{tpu_custom_call.1} parent=1 // pred_check
      _
    $region7: #{tpu_custom_call.1} parent=1 // pred_check_branch
      %25 = sbr.rel (0) target = $region9
    $region8: #{tpu_custom_call.1} parent=1 // pred_region
      %s26 = sadd.s32 0, 0
      %s28 = ssub.s32 256, 256
      %29 = vsyncadd [#allocation7], %s28
      %s30 = smul.addr %s26, 8
      %s31 = smul.addr %s30, 32
      %s32 = scalar_lea.hbm %s1, %s31
      %s34 = sshll.u32 [#allocation6], 4
      %s35 = int_to_ptr.vmem [resolvable:$true] %s34
      %37 = dma.hbm_to_vmem [thread:$0]  %s32, 256, %s35, [#allocation7]
    $region9: #{tpu_custom_call.1} parent=1 // pred_fallthru
      _
    // Predicated region
    $region10: #{tpu_custom_call.1} parent=1 // pred_check
      _
    $region11: #{tpu_custom_call.1} parent=1 // pred_check_branch
      %39 = sbr.rel (0) target = $region13
    $region12: #{tpu_custom_call.1} parent=1 // pred_region
      %40 = dma.done [#allocation4], 256
    $region13: #{tpu_custom_call.1} parent=1 // pred_fallthru
      _
    // Predicated region
    $region14: #{tpu_custom_call.1} parent=1 // pred_check
      _
    $region15: #{tpu_custom_call.1} parent=1 // pred_check_branch
      %42 = sbr.rel (0) target = $region17
    $region16: #{tpu_custom_call.1} parent=1 // pred_region
      %43 = dma.done [#allocation7], 256
    $region17: #{tpu_custom_call.1} parent=1 // pred_fallthru
      _
    %s44 = sadd.s32 0, 0
    %s45 = sadd.s32 0, 0
    %p46 = scmp.eq.s32.totalorder 0, 0
    // Predicated region
    $region18: #{tpu_custom_call.1} parent=1 // pred_check
      %p47 = pneg %p46
    $region19: #{tpu_custom_call.1} parent=1 // pred_check_branch
      %49 = sbr.rel (%p47) target = $region21
    $region20: #{tpu_custom_call.1} parent=1 // pred_region
      %50 = vst [vmem:[#allocation2] sm:$0xff] 0.0
      %51 = vst [vmem:[#allocation2 + $0x8] sm:$0xff] 0.0
    $region21: #{tpu_custom_call.1} parent=1 // pred_fallthru
      _
    %v52 = vld [vmem:[#allocation2] sm:$0xff]
    %v53 = vld [vmem:[#allocation2 + $0x8] sm:$0xff]
    %v54 = vld [vmem:[#allocation3] sm:$0xff]
    %v55 = vld [vmem:[#allocation3 + $0x8] sm:$0xff]
    %v56 = vld [vmem:[#allocation6] sm:$0xff]
    %v57 = vld [vmem:[#allocation6 + $0x8] sm:$0xff]
    %v58 = vsub.f32 %v54, %v56
    %v59 = vsub.f32 %v55, %v57
    %v60 = vand.u32 2147483647, %v58
    %v61 = vand.u32 2147483647, %v59
    %v62 = vadd.f32 %v52, %v60
    %v63 = vadd.f32 %v53, %v61
    %64 = vst [vmem:[#allocation2] sm:$0xff] %v62
    %65 = vst [vmem:[#allocation2 + $0x8] sm:$0xff] %v63
    // Predicated region
    $region22: #{tpu_custom_call.1} parent=1 // pred_check
      %p66 = pneg %p46
    $region23: #{tpu_custom_call.1} parent=1 // pred_check_branch
      %68 = sbr.rel (%p66) target = $region25
    $region24: #{tpu_custom_call.1} parent=1 // pred_region
      %v69 = vld [vmem:[#allocation2] sm:$0xff]
      %v70 = vld [vmem:[#allocation2 + $0x8] sm:$0xff]
      %v73 = vcombine.high %v69, %v69
      %v75 = vunpack.c.l.s4 1983009808
      %v76 = vunpack.c.0.s8 %v75
      %v77 = vlaneseq
      %v78 = vshrl.u32 %v77, 7
      %v79 = vsub.s32 %v76, %v78
      %v80 = vrot.slane %v69, %v79
      %v82 = vunpack.c.l.s4 1983009808
      %v83 = vunpack.c.0.s8 %v82
      %v84 = vlaneseq
      %v85 = vshrl.u32 %v84, 7
      %v86 = vsub.s32 %v83, %v85
      %v87 = vrot.slane %v73, %v86
      %v88 = vcombine.high %v80, %v80
      %v89 = vcombine.high %v87, %v87
      %v90 = vcombine.high %v70, %v70
      %v92 = vunpack.c.l.s4 1983009808
      %v93 = vunpack.c.0.s8 %v92
      %v94 = vlaneseq
      %v95 = vshrl.u32 %v94, 7
      %v96 = vsub.s32 %v93, %v95
      %v97 = vrot.slane %v70, %v96
      %v99 = vunpack.c.l.s4 1983009808
      %v100 = vunpack.c.0.s8 %v99
      %v101 = vlaneseq
      %v102 = vshrl.u32 %v101, 7
      %v103 = vsub.s32 %v100, %v102
      %v104 = vrot.slane %v90, %v103
      %v105 = vcombine.high %v97, %v97
      %v106 = vcombine.high %v104, %v104
      %vm115 = vcmask 1041408
      %v116 = vsel %vm115, %v80, 0.0
      %v117 = vsel %vm115, %v88, 0.0
      %v118 = vadd.f32 %v116, %v117
      %v119 = vsel %vm115, %v87, 0.0
      %v120 = vadd.f32 %v118, %v119
      %v121 = vsel %vm115, %v89, 0.0
      %v122 = vadd.f32 %v120, %v121
      %v123 = vsel %vm115, %v97, 0.0
      %v124 = vadd.f32 %v122, %v123
      %v125 = vsel %vm115, %v105, 0.0
      %v126 = vadd.f32 %v124, %v125
      %v127 = vsel %vm115, %v104, 0.0
      %v128 = vadd.f32 %v126, %v127
      %v129 = vsel %vm115, %v106, 0.0
      %v130 = vadd.f32 %v128, %v129
      %131 = vadd.xlane.f32.xlu0 %v130
      %v132 = vpop.xlane.xlu0 %131
      %v133 = vrot.slane %v132, 4
      %v134 = vadd.f32 %v132, %v133
      %v135 = vrot.slane %v134, 2
      %v136 = vadd.f32 %v134, %v135
      %v137 = vrot.slane %v136, 1
      %v138 = vadd.f32 %v136, %v137
      %s139 = vtos %v138
      %s140 = scalar_lea.smem [#allocation8], 0
      %141 = sst [smem:[%s140]] %s139
    $region25: #{tpu_custom_call.1} parent=1 // pred_fallthru
      _
    // Predicated region
    $region26: #{tpu_custom_call.1} parent=1 // pred_check
      _
    $region27: #{tpu_custom_call.1} parent=1 // pred_check_branch
      %143 = sbr.rel (0) target = $region29
    $region28: #{tpu_custom_call.1} parent=1 // pred_region
      %s145 = ssub.s32 16, 16
      %146 = vsyncadd [#allocation5], %s145
      %149 = dma.smem_to_hbm [#allocation8], 16, %s2, [#allocation5]
    $region29: #{tpu_custom_call.1} parent=1 // pred_fallthru
      _
    // Predicated region
    $region30: #{tpu_custom_call.1} parent=1 // pred_check
      _
    $region31: #{tpu_custom_call.1} parent=1 // pred_check_branch
      %151 = sbr.rel (0) target = $region33
    $region32: #{tpu_custom_call.1} parent=1 // pred_region
      %152 = dma.done [#allocation5], 16
    $region33: #{tpu_custom_call.1} parent=1 // pred_fallthru
      _
    %153 = sfence
    %154 = vsyncpa [#allocation4], 1
    %155 = vsyncpa [#allocation7], 1
    %156 = vsyncpa [#allocation5], 1

</llo_original>
